<compile_context>
chip_gen: v7x
topology: tpu7x:2x2x1
jax: 0.10.0
libtpu: 0.0.40
codegen_flags: <defaults>
</compile_context>

<pallas_src>
import functools
import math

import jax
import jax.numpy as jnp
import numpy as np
from jax.experimental import pallas as pl
from jax.experimental.pallas import tpu as pltpu


def _round_up(x, m):
    return ((x + m - 1) // m) * m


def _pad_to(x, shape):
    """Zero-pad x up to `shape`; returns x unchanged when it is already there."""
    pads = tuple((0, t - s) for s, t in zip(x.shape, shape))
    if all(p == (0, 0) for p in pads):
        return x
    return jnp.pad(x, pads)


def _const_block_spec(block_shape, index_map):
    """Single-buffered BlockSpec for a block whose index_map is constant."""
    try:
        return pl.BlockSpec(block_shape, index_map, pipeline_mode=pl.Buffered(1))
    except TypeError:  # older jax without pipeline_mode: fall back to default
        return pl.BlockSpec(block_shape, index_map)


# ----------------------------------------------------------------------------
# Kernels
# ----------------------------------------------------------------------------
def _aligner_kernel_cached(cdt, hs_ref, w_ref, b_ref, mem_ref, mask_ref,
                           out_ref, h_ref):
    # hs_ref:   (tq, Hp) input dtype   — query tile (cast to cdt in-kernel)
    # w_ref:    (Hp, Hp) cdt           — linear weight, (in, out) layout
    # b_ref:    (1, Hp)  f32           — linear bias
    # mem_ref:  (ts, Hp) input/cdt     — memory tile
    # mask_ref: (1, ts)  f32           — ce_mask tile (1 = keep, 0 = -1e6)
    # out_ref:  (tq, ts)
    # h_ref:    (tq, Hp) cdt scratch   — relu(linear(hs)), cached across S.
    #
    # Valid only while the S grid axis (axis 2) is innermost, sequential and
    # non-parallel; the wrapper guarantees this ("arbitrary" on axis 2).
    @pl.when(pl.program_id(2) == 0)
    def _():
        h = jnp.dot(hs_ref[...].astype(cdt), w_ref[...],
                    preferred_element_type=jnp.float32)
        h_ref[...] = jnp.maximum(h + b_ref[...], 0.0).astype(h_ref.dtype)

    # sim = h @ memory^T as a contraction over H (dim 1 of both operands):
    # feeds the MXU directly, no XLU transpose of the memory tile.
    sim = jax.lax.dot_general(
        h_ref[...], mem_ref[...].astype(cdt),
        dimension_numbers=(((1,), (1,)), ((), ())),
        preferred_element_type=jnp.float32)

    out_ref[...] = jnp.where(mask_ref[...] > 0.0, sim, -1000000.0).astype(out_ref.dtype)


def _aligner_kernel_nocache(cdt, hs_ref, w_ref, b_ref, mem_ref, mask_ref, out_ref):
    # Same computation, but h is recomputed for every S tile so every grid
    # axis can be marked "parallel" (keeps the second TensorCore busy when
    # B * num_q_tiles < 2).  The (tq,Hp)x(Hp,Hp) recompute is cheap relative
    # to streaming the (ts, Hp) memory block for typical NER hidden sizes.
    h = jnp.dot(hs_ref[...].astype(cdt), w_ref[...],
                preferred_element_type=jnp.float32)
    h = jnp.maximum(h + b_ref[...], 0.0).astype(cdt)

    sim = jax.lax.dot_general(
        h, mem_ref[...].astype(cdt),
        dimension_numbers=(((1,), (1,)), ((), ())),
        preferred_element_type=jnp.float32)

    out_ref[...] = jnp.where(mask_ref[...] > 0.0, sim, -1000000.0).astype(out_ref.dtype)


# ----------------------------------------------------------------------------
# Tile / VMEM planning
# ----------------------------------------------------------------------------
def _vmem_bytes(tq, ts, Hp, hs_isz, mem_isz, cdt_isz, cache_h):
    b = Hp * Hp * cdt_isz               # weight (single-buffered constant block)
    b += Hp * 4                         # bias   (single-buffered)
    b += 2 * tq * Hp * hs_isz           # hs block (double-buffered)
    b += 2 * (ts * Hp * mem_isz + ts * 4)   # memory + mask blocks
    b += 2 * tq * ts * 4                # output block (f32 worst case)
    if cache_h:
        b += tq * Hp * cdt_isz          # h scratch
    return b


def _choose_tiles(Q, S, Hp, hs_isz, mem_isz, cdt_isz, budget, max_ts):
    Sp128 = _round_up(S, 128)
    ts_cands = {c for c in (1024, 512, 256, 128) if c <= min(Sp128, max_ts)}
    if Sp128 <= max_ts:
        ts_cands.add(Sp128)             # whole-S tile when it fits
    ts_cands = sorted(ts_cands, reverse=True)

    if Q <= 256:
        tq_cands = [_round_up(Q, 8)]
    else:
        Qp128 = _round_up(Q, 128)
        tq_cands = {c for c in (512, 256, 128) if c <= Qp128}
        if Qp128 <= 512:
            tq_cands.add(Qp128)
        tq_cands = sorted(tq_cands, reverse=True)

    for tq in tq_cands:
        for ts in ts_cands:
            if _vmem_bytes(tq, ts, Hp, hs_isz, mem_isz, cdt_isz, True) <= budget:
                return tq, ts
    return tq_cands[-1], ts_cands[-1]


def prepare_linear_params(weight, bias, Hp, compute_dtype):
    """Transpose to (in, out), cast, pad.  In a real model this is done once
    at parameter-load time, not per forward call."""
    w_p = _pad_to(weight.T.astype(compute_dtype), (Hp, Hp))
    b_p = _pad_to(bias.astype(jnp.float32), (Hp,)).reshape(1, Hp)
    return w_p, b_p


# ----------------------------------------------------------------------------
# Forward
# ----------------------------------------------------------------------------
def aligner_forward(hs, memory, weight, bias, ce_mask=None,
                    compute_dtype=jnp.bfloat16, out_dtype=jnp.float32,
                    tile_q=None, tile_s=None):
    """Pallas forward of Aligner.

    hs:      (B, Q, H)
    memory:  (B, S, H)
    weight:  (H, H)  torch nn.Linear layout (out_features, in_features)
    bias:    (H,)
    ce_mask: (B, S) or None  (nonzero = keep, zero = fill with -1e6)
    """
    B, Q, H = hs.shape
    _, S, _ = memory.shape
    cdt = jnp.dtype(compute_dtype)
    Hp = _round_up(H, 128)
    # TODO(synk): for very large hidden dims (Hp*Hp*itemsize approaching the
    # VMEM region, e.g. Hp>=4096 bf16 on v7x) the Linear needs an explicit
    # H-contraction split with an f32 accumulator instead of one full (Hp,Hp)
    # weight block; typical NER hidden sizes (<= ~2K) fit comfortably.

    # ---- generation-aware VMEM budget ---------------------------------------
    try:
        cap = int(pltpu.get_tpu_info().vmem_capacity_bytes)
    except Exception:
        cap = 64 << 20                          # conservative (v7x-like) fallback
    if cap >= (100 << 20):                      # v5e / v6e: 128 MiB physical
        region_cap, max_ts = 100 << 20, 1024
    else:                                       # v7x: 64 MiB physical
        region_cap, max_ts = 56 << 20, 512
    budget = int(region_cap * 0.8)              # headroom for compiler temporaries

    hs_isz = jnp.dtype(hs.dtype).itemsize
    mem_in_isz = jnp.dtype(memory.dtype).itemsize

    if tile_q is not None and tile_s is not None:
        tq, ts = int(tile_q), int(tile_s)
    else:
        tq, ts = _choose_tiles(Q, S, Hp, hs_isz, mem_in_isz, cdt.itemsize,
                               budget, max_ts)
    assert tq % 8 == 0 and ts % 128 == 0, "tile_q must be %8==0, tile_s %128==0"

    Qp = _round_up(Q, tq)
    Sp = _round_up(S, ts)
    n_q_tiles = Qp // tq
    n_s_tiles = Sp // ts

    # Cache h across S only when it pays off AND there is enough outer-axis
    # work to keep both v7x TensorCores busy without parallelizing S.
    cache_h = (n_s_tiles > 1) and (B * n_q_tiles >= 2)

    # memory is re-streamed n_q_tiles times: pre-cast on the host only when
    # that read amplification makes the extra HBM pass pay for itself.
    precast_memory = (cdt != jnp.dtype(memory.dtype)) and (n_q_tiles >= 2)

    # ---- host-side prep (pads/casts skipped when they are no-ops) -----------
    w_p, b_p = prepare_linear_params(weight, bias, Hp, cdt)
    hs_p = _pad_to(hs, (B, Qp, Hp))                         # cast in-kernel
    mem_src = memory.astype(cdt) if precast_memory else memory
    mem_p = _pad_to(mem_src, (B, Sp, Hp))
    if ce_mask is None:
        mask_f = jnp.ones((B, S), dtype=jnp.float32)
    else:
        mask_f = ce_mask.astype(jnp.float32)
    mask_p = _pad_to(mask_f, (B, Sp)).reshape(B, 1, Sp)     # padded cols -> masked

    # ---- VMEM limit from the actual block footprint -------------------------
    mem_blk_isz = jnp.dtype(mem_p.dtype).itemsize
    est = _vmem_bytes(tq, ts, Hp, hs_isz, mem_blk_isz, cdt.itemsize, cache_h)
    vmem_limit = int(min(region_cap, max(16 << 20, int(est * 1.5) + (2 << 20))))

    in_specs = [
        pl.BlockSpec((None, tq, Hp), lambda b, qi, si: (b, qi, 0)),   # hs
        _const_block_spec((Hp, Hp), lambda b, qi, si: (0, 0)),        # weight (in,out), 1-buffered
        _const_block_spec((1, Hp), lambda b, qi, si: (0, 0)),         # bias, 1-buffered
        pl.BlockSpec((None, ts, Hp), lambda b, qi, si: (b, si, 0)),   # memory
        pl.BlockSpec((None, 1, ts), lambda b, qi, si: (b, 0, si)),    # ce_mask
    ]
    out_specs = pl.BlockSpec((None, tq, ts), lambda b, qi, si: (b, qi, si))

    if cache_h:
        kernel = functools.partial(_aligner_kernel_cached, cdt)
        scratch = [pltpu.VMEM((tq, Hp), cdt)]
        dims = ("parallel", "parallel", "arbitrary")
    else:
        kernel = functools.partial(_aligner_kernel_nocache, cdt)
        scratch = []
        dims = ("parallel", "parallel", "parallel")

    out_p = pl.pallas_call(
        kernel,
        out_shape=jax.ShapeDtypeStruct((B, Qp, Sp), jnp.dtype(out_dtype)),
        grid_spec=pltpu.PrefetchScalarGridSpec(
            num_scalar_prefetch=0,
            grid=(B, n_q_tiles, n_s_tiles),
            in_specs=in_specs,
            out_specs=out_specs,
            scratch_shapes=scratch,
        ),
        compiler_params=pltpu.CompilerParams(
            dimension_semantics=dims,
            vmem_limit_bytes=vmem_limit,
        ),
    )(hs_p, w_p, b_p, mem_p, mask_p)

    if Qp != Q or Sp != S:
        out_p = out_p[:, :Q, :S]
    return out_p


def aligner_reference(hs, memory, weight, bias, ce_mask):
    """Pure-JAX f32 reference matching the PyTorch module."""
    hp = jax.lax.Precision.HIGHEST
    h = jax.nn.relu(jnp.einsum("bqh,kh->bqk", hs, weight, precision=hp) + bias)
    sim = jnp.einsum("bqk,bsk->bqs", h, memory, precision=hp)
    if ce_mask is not None:
        sim = jnp.where((ce_mask > 0)[:, None, :], sim, -1000000.0)
    return sim


# ----------------------------------------------------------------------------
# Self-test
# ----------------------------------------------------------------------------
if __name__ == "__main__":
    def make_inputs(key, B, Q, S, H, n_masked):
        k_hs, k_mem, k_w, k_b = jax.random.split(key, 4)
        hs = jax.random.normal(k_hs, (B, Q, H), dtype=jnp.float32)
        memory = jax.random.normal(k_mem, (B, S, H), dtype=jnp.float32)
        # torch.nn.Linear default init: U(-1/sqrt(H), 1/sqrt(H)), layout (out, in).
        bound = 1.0 / math.sqrt(H)
        weight = jax.random.uniform(k_w, (H, H), minval=-bound, maxval=bound,
                                    dtype=jnp.float32)
        bias = jax.random.uniform(k_b, (H,), minval=-bound, maxval=bound,
                                  dtype=jnp.float32)
        ce_mask = jnp.concatenate(
            [jnp.ones((B, S - n_masked), jnp.int32),
             jnp.zeros((B, n_masked), jnp.int32)], axis=1)
        return hs, memory, weight, bias, ce_mask

    # (1) small shapes, f32 compute path (single S tile -> no-cache kernel).
    hs, memory, weight, bias, ce_mask = make_inputs(jax.random.PRNGKey(0),
                                                    2, 8, 16, 32, 4)
    ref = aligner_reference(hs, memory, weight, bias, ce_mask)
    out = jax.block_until_ready(
        aligner_forward(hs, memory, weight, bias, ce_mask,
                        compute_dtype=jnp.float32))
    np.testing.assert_allclose(np.asarray(out), np.asarray(ref),
                               rtol=1e-2, atol=1e-2)

    # (2) small shapes, bf16-operand path (f32 MXU accumulation).
    out = jax.block_until_ready(
        aligner_forward(hs, memory, weight, bias, ce_mask,
                        compute_dtype=jnp.bfloat16))
    np.testing.assert_allclose(np.asarray(out), np.asarray(ref),
                               rtol=5e-2, atol=5e-1)

    # (3) forced multi-tile grid -> exercises the cached-h kernel
    #     (S innermost "arbitrary") with multiple q and s tiles.
    hs, memory, weight, bias, ce_mask = make_inputs(jax.random.PRNGKey(1),
                                                    2, 16, 256, 64, 7)
    ref = aligner_reference(hs, memory, weight, bias, ce_mask)
    out = jax.block_until_ready(
        aligner_forward(hs, memory, weight, bias, ce_mask,
                        compute_dtype=jnp.float32, tile_q=8, tile_s=128))
    np.testing.assert_allclose(np.asarray(out), np.asarray(ref),
                               rtol=1e-2, atol=1e-2)

    # (4) same shapes, bf16 path -> exercises the host pre-cast of `memory`
    #     (re-streamed twice) plus ce_mask=None handling elsewhere untouched.
    out = jax.block_until_ready(
        aligner_forward(hs, memory, weight, bias, ce_mask,
                        compute_dtype=jnp.bfloat16, tile_q=8, tile_s=128))
    np.testing.assert_allclose(np.asarray(out), np.asarray(ref),
                               rtol=5e-2, atol=5e-1)

    print("KERNEL_OK")
</pallas_src>

<mosaic_0001>
module attributes {stable_mosaic.version = 11 : i64} {
  func.func @_aligner_kernel_nocache(%arg0: i32, %arg1: i32, %arg2: i32, %arg3: memref<1x8x128xf32, #tpu.memory_space<vmem>>, %arg4: memref<128x128xf32, #tpu.memory_space<vmem>>, %arg5: memref<1x128xf32, #tpu.memory_space<vmem>>, %arg6: memref<1x128x128xf32, #tpu.memory_space<vmem>>, %arg7: memref<1x1x128xf32, #tpu.memory_space<vmem>>, %arg8: memref<1x8x128xf32, #tpu.memory_space<vmem>>) attributes {dimension_semantics = [#tpu.dimension_semantics<parallel>, #tpu.dimension_semantics<parallel>, #tpu.dimension_semantics<parallel>], iteration_bounds = array<i64: 2, 1, 1>, scalar_prefetch = 0 : i64, scratch_operands = 0 : i64, tpu.core_type = #tpu.core_type<tc>, window_params = [{transform_indices = @transform_0, window_bounds = array<i64: 1, 8, 128>}, {pipeline_mode = #tpu.pipeline_mode<synchronous>, transform_indices = @transform_1, window_bounds = array<i64: 128, 128>}, {pipeline_mode = #tpu.pipeline_mode<synchronous>, transform_indices = @transform_2, window_bounds = array<i64: 1, 128>}, {transform_indices = @transform_3, window_bounds = array<i64: 1, 128, 128>}, {transform_indices = @transform_4, window_bounds = array<i64: 1, 1, 128>}, {transform_indices = @transform_5, window_bounds = array<i64: 1, 8, 128>}]} {
    %c0 = arith.constant 0 : index
    %c0_0 = arith.constant 0 : index
    %c0_1 = arith.constant 0 : index
    %0 = vector.load %arg3[%c0, %c0_0, %c0_1] : memref<1x8x128xf32, #tpu.memory_space<vmem>>, vector<1x8x128xf32>
    %1 = vector.shape_cast %0 : vector<1x8x128xf32> to vector<8x128xf32>
    %c0_2 = arith.constant 0 : index
    %c0_3 = arith.constant 0 : index
    %2 = vector.load %arg4[%c0_2, %c0_3] : memref<128x128xf32, #tpu.memory_space<vmem>>, vector<128x128xf32>
    %cst = arith.constant dense<0.000000e+00> : vector<8x128xf32>
    %3 = tpu.matmul %1, %2, %cst {dimension_numbers = #tpu.dot_dimension_numbers<[1], [0], [0], [1], [0, 0, 1, 1], [], []>} : vector<8x128xf32>, vector<128x128xf32>, vector<8x128xf32> -> vector<8x128xf32>
    %c0_4 = arith.constant 0 : index
    %c0_5 = arith.constant 0 : index
    %4 = vector.load %arg5[%c0_4, %c0_5] : memref<1x128xf32, #tpu.memory_space<vmem>>, vector<1x128xf32>
    %5 = vector.broadcast %4 : vector<1x128xf32> to vector<8x128xf32>
    %6 = arith.addf %3, %5 : vector<8x128xf32>
    %cst_6 = arith.constant 0.000000e+00 : f32
    %7 = vector.broadcast %cst_6 : f32 to vector<8x128xf32>
    %8 = arith.maximumf %6, %7 : vector<8x128xf32>
    %c0_7 = arith.constant 0 : index
    %c0_8 = arith.constant 0 : index
    %c0_9 = arith.constant 0 : index
    %9 = vector.load %arg6[%c0_7, %c0_8, %c0_9] : memref<1x128x128xf32, #tpu.memory_space<vmem>>, vector<1x128x128xf32>
    %10 = vector.shape_cast %9 : vector<1x128x128xf32> to vector<128x128xf32>
    %cst_10 = arith.constant dense<0.000000e+00> : vector<8x128xf32>
    %11 = tpu.matmul %8, %10, %cst_10 {dimension_numbers = #tpu.dot_dimension_numbers<[1], [1], [0], [0], [0, 0, 1, 0], [], []>} : vector<8x128xf32>, vector<128x128xf32>, vector<8x128xf32> -> vector<8x128xf32>
    %c0_11 = arith.constant 0 : index
    %c0_12 = arith.constant 0 : index
    %c0_13 = arith.constant 0 : index
    %12 = vector.load %arg7[%c0_11, %c0_12, %c0_13] : memref<1x1x128xf32, #tpu.memory_space<vmem>>, vector<1x1x128xf32>
    %13 = vector.shape_cast %12 : vector<1x1x128xf32> to vector<1x128xf32>
    %cst_14 = arith.constant 0.000000e+00 : f32
    %14 = vector.broadcast %cst_14 : f32 to vector<1x128xf32>
    %15 = arith.cmpf ogt, %13, %14 : vector<1x128xf32>
    %cst_15 = arith.constant -1.000000e+06 : f32
    %16 = vector.shape_cast %15 : vector<1x128xi1> to vector<1x128xi1>
    %17 = vector.broadcast %16 : vector<1x128xi1> to vector<8x128xi1>
    %18 = vector.broadcast %cst_15 : f32 to vector<8x128xf32>
    %19 = arith.select %17, %11, %18 : vector<8x128xi1>, vector<8x128xf32>
    %c0_16 = arith.constant 0 : index
    %c0_17 = arith.constant 0 : index
    %c0_18 = arith.constant 0 : index
    %20 = vector.load %arg8[%c0_16, %c0_17, %c0_18] : memref<1x8x128xf32, #tpu.memory_space<vmem>>, vector<1x8x128xf32>
    %21 = vector.shape_cast %20 : vector<1x8x128xf32> to vector<8x128xf32>
    %22 = vector.shape_cast %19 : vector<8x128xf32> to vector<1x8x128xf32>
    tpu.vector_store %arg8[%c0_16, %c0_17, %c0_18], %22 {strides = array<i32>} : memref<1x8x128xf32, #tpu.memory_space<vmem>>, vector<1x8x128xf32>,
    return
  }
  func.func @transform_0(%arg0: i32, %arg1: i32, %arg2: i32) -> (i32, i32, i32) {
    %c0_i32 = arith.constant 0 : i32
    %c0_i32_0 = arith.constant 0 : i32
    return %arg0, %arg1, %c0_i32 : i32, i32, i32
  }
  func.func @transform_1(%arg0: i32, %arg1: i32, %arg2: i32) -> (i32, i32) {
    %c0_i32 = arith.constant 0 : i32
    %c0_i32_0 = arith.constant 0 : i32
    %c0_i32_1 = arith.constant 0 : i32
    return %c0_i32, %c0_i32_0 : i32, i32
  }
  func.func @transform_2(%arg0: i32, %arg1: i32, %arg2: i32) -> (i32, i32) {
    %c0_i32 = arith.constant 0 : i32
    %c0_i32_0 = arith.constant 0 : i32
    %c0_i32_1 = arith.constant 0 : i32
    return %c0_i32, %c0_i32_0 : i32, i32
  }
  func.func @transform_3(%arg0: i32, %arg1: i32, %arg2: i32) -> (i32, i32, i32) {
    %c0_i32 = arith.constant 0 : i32
    %c0_i32_0 = arith.constant 0 : i32
    return %arg0, %arg2, %c0_i32 : i32, i32, i32
  }
  func.func @transform_4(%arg0: i32, %arg1: i32, %arg2: i32) -> (i32, i32, i32) {
    %c0_i32 = arith.constant 0 : i32
    %c0_i32_0 = arith.constant 0 : i32
    return %arg0, %c0_i32, %arg2 : i32, i32, i32
  }
  func.func @transform_5(%arg0: i32, %arg1: i32, %arg2: i32) -> (i32, i32, i32) {
    %c0_i32 = arith.constant 0 : i32
    return %arg0, %arg1, %arg2 : i32, i32, i32
  }
}

</mosaic_0001>

<llo_original>
// kernel: tpu_custom_call.1
$region0: #{tpu_custom_call.1}
  #allocation0 [shape = 'u32[]', space=smem, size = 0x4, offset = 0x4, fixed_abs, tag = 'smem constant byte address 0x4 - core index']
  #allocation1 [shape = 'u32[144,128]{1,0:T(1,128)}', space=vmem, size = 0x12000, scoped, tag = 'internal scratch']
  %s0 = inlined_call_operand.hbm [shape: f32[2,8,128], index: 0, kind: input, shape index: {}]
  %s1 = inlined_call_operand.hbm [shape: f32[128,128], index: 1, kind: input, shape index: {}]
  %s2 = inlined_call_operand.vmem [shape: f32[1,128], index: 2, kind: input, shape index: {}]
  %s3 = inlined_call_operand.hbm [shape: f32[2,128,128], index: 3, kind: input, shape index: {}]
  %s4 = inlined_call_operand.vmem [shape: f32[2,1,128], index: 4, kind: input, shape index: {}]
  %s5 = inlined_call_operand.hbm [shape: f32[2,8,128], index: 5, kind: output, shape index: {}]
  %s6 = sld [smem:[#allocation0]]
  $region65: #{tpu_custom_call.1} parent=0
    _
  %s8 = ssub.s32 1, %s6
  %s9 = scalar_select 0, %s8, %s6
  $region1: #{tpu_custom_call.1} parent=0
    #allocation2 [shape = 'u8[8192]{0}', space=vmem, size = 0x2000, scoped, tag = 'input window, operand 0']
    #allocation3 [shape = 's32[2]{0}', space=sflag, size = 0x8, scoped, tag = 'scoped memory for tpu_custom_call.1']
    #allocation4 [shape = 's32[2]{0}', space=sflag, size = 0x8, scoped, tag = 'scoped memory for tpu_custom_call.1']
    #allocation5 [shape = 'u8[65536]{0}', space=vmem, size = 0x10000, scoped, tag = 'input window, operand 1, single buffered']
    #allocation6 [shape = 's32[1]{0}', space=sflag, size = 0x4, scoped, tag = 'scoped memory for tpu_custom_call.1']
    #allocation7 [shape = 'u8[131072]{0}', space=vmem, size = 0x20000, scoped, tag = 'input window, operand 3']
    #allocation8 [shape = 'u8[8192]{0}', space=vmem, size = 0x2000, scoped, tag = 'output window, operand 0']
    %10 = vsyncpa [#allocation3], 0
    %s11 = scalar_lea.sflag [#allocation3], 1
    %12 = vsyncpa %s11, 0
    %13 = vsyncpa [#allocation6], 0
    %14 = vsyncpa [#allocation4], 0
    %s15 = scalar_lea.sflag [#allocation4], 1
    %16 = vsyncpa %s15, 0
    loop: start=0, step=1, limit=4
    $region2: #{tpu_custom_call.1} parent=1 // loop_pre_header
      _
    $region3: #{tpu_custom_call.1} parent=1 // loop_header
      %s18 = sphi 0, %s22
      %p19 = scmp.ge.s32.totalorder %s18, 4
      %s25 = sphi 0, %s44
      %s26 = sphi 0, %s40
      %s27 = sphi 0, %s36
      %s28 = sphi 0, %s25
      %s29 = sphi 0, %s26
      %s30 = sphi 0, %s27
      %s31 = sphi 0, %s28
      %s32 = sphi 0, %s29
      %s33 = sphi 0, %s30
      %s49 = sphi 0, %s51
      %s52 = sphi 0, %s49
      %s53 = sphi 0, %s52
      %s69 = sphi 0, %s53
      %s73 = sphi 0, %s73
      %s75 = sphi 0, %s73
      %s76 = sphi 0, %s75
      %s90 = sphi 0, %s76
      %s94 = sphi 0, %s94
      %s96 = sphi 0, %s94
      %s97 = sphi 0, %s96
      %s111 = sphi 0, %s97
      %s119 = sphi 0, %s121
      %s122 = sphi 0, %s119
      %s123 = sphi 0, %s122
      %s139 = sphi 0, %s123
      %s147 = sphi 0, %s149
      %s150 = sphi 0, %s147
      %s151 = sphi 0, %s150
      %s167 = sphi 0, %s151
      %s177 = sphi 0, %s179
      %s180 = sphi 0, %s177
      %s181 = sphi 0, %s180
      %s197 = sphi 0, %s181
    $region4: #{tpu_custom_call.1} parent=1 // loop_header_branch
      %21 = sbr.rel (%p19) target = $region8
    $region5: #{tpu_custom_call.1} parent=1 // loop_body
      %s23 = ssub.s32 %s18, 1
      %s24 = ssub.s32 %s18, 2
      %s34 = sadd.s32 1, %s27
      %p35 = scmp.ge.s32.totalorder %s34, 1
      %s36 = scalar_select %p35, 0, %s34
      %s37 = sadd.s32 1, %s26
      %s38 = scalar_select %p35, %s37, %s26
      %p39 = scmp.ge.s32.totalorder %s38, 1
      %s40 = scalar_select %p39, 0, %s38
      %s41 = sadd.s32 1, %s25
      %s42 = scalar_select %p39, %s41, %s25
      %p43 = scmp.ge.s32.totalorder %s42, 2
      %s44 = scalar_select %p43, 0, %s42
      %s45 = ssub.s32 %s25, %s44
      %s46 = ssub.s32 %s26, %s40
      %s47 = sor.u32 %s45, %s46
      %p48 = scmp.eq.s32.totalorder %s47, 0
      %s50 = sadd.s32 %s49, 1
      %s51 = scalar_select %p48, %s49, %s50
      %p54 = pneg %p48
      %p55 = scmp.eq.s32.totalorder %s18, 1
      %p56 = por %p54, %p55
      %p57 = scmp.ne.s32.totalorder %s49, %s52
      %p58 = scmp.eq.s32.totalorder %s18, 0
      %p59 = por %p57, %p58
      %p60 = scmp.ne.s32.totalorder %s49, %s52
      %p61 = scmp.eq.s32.totalorder %s23, 1
      %p62 = por %p60, %p61
      %p63 = scmp.ne.s32.totalorder %s52, %s53
      %p64 = scmp.eq.s32.totalorder %s23, 0
      %p65 = por %p63, %p64
      %p66 = scmp.ne.s32.totalorder %s52, %s53
      %p67 = scmp.eq.s32.totalorder %s24, 1
      %p68 = por %p66, %p67
      %p70 = scmp.ne.s32.totalorder %s53, %s69
      %p71 = scmp.eq.s32.totalorder %s24, 0
      %p72 = por %p70, %p71
      %s74 = sadd.s32 %s73, 1
      %p77 = scmp.eq.s32.totalorder %s18, 1
      %p78 = scmp.ne.s32.totalorder %s73, %s75
      %p79 = scmp.eq.s32.totalorder %s18, 0
      %p80 = por %p78, %p79
      %p81 = scmp.ne.s32.totalorder %s73, %s75
      %p82 = scmp.eq.s32.totalorder %s23, 1
      %p83 = por %p81, %p82
      %p84 = scmp.ne.s32.totalorder %s75, %s76
      %p85 = scmp.eq.s32.totalorder %s23, 0
      %p86 = por %p84, %p85
      %p87 = scmp.ne.s32.totalorder %s75, %s76
      %p88 = scmp.eq.s32.totalorder %s24, 1
      %p89 = por %p87, %p88
      %p91 = scmp.ne.s32.totalorder %s76, %s90
      %p92 = scmp.eq.s32.totalorder %s24, 0
      %p93 = por %p91, %p92
      %s95 = sadd.s32 %s94, 1
      %p98 = scmp.eq.s32.totalorder %s18, 1
      %p99 = scmp.ne.s32.totalorder %s94, %s96
      %p100 = scmp.eq.s32.totalorder %s18, 0
      %p101 = por %p99, %p100
      %p102 = scmp.ne.s32.totalorder %s94, %s96
      %p103 = scmp.eq.s32.totalorder %s23, 1
      %p104 = por %p102, %p103
      %p105 = scmp.ne.s32.totalorder %s96, %s97
      %p106 = scmp.eq.s32.totalorder %s23, 0
      %p107 = por %p105, %p106
      %p108 = scmp.ne.s32.totalorder %s96, %s97
      %p109 = scmp.eq.s32.totalorder %s24, 1
      %p110 = por %p108, %p109
      %p112 = scmp.ne.s32.totalorder %s97, %s111
      %p113 = scmp.eq.s32.totalorder %s24, 0
      %p114 = por %p112, %p113
      %s115 = ssub.s32 %s25, %s44
      %s116 = ssub.s32 %s27, %s36
      %s117 = sor.u32 %s115, %s116
      %p118 = scmp.eq.s32.totalorder %s117, 0
      %s120 = sadd.s32 %s119, 1
      %s121 = scalar_select %p118, %s119, %s120
      %p124 = pneg %p118
      %p125 = scmp.eq.s32.totalorder %s18, 1
      %p126 = por %p124, %p125
      %p127 = scmp.ne.s32.totalorder %s119, %s122
      %p128 = scmp.eq.s32.totalorder %s18, 0
      %p129 = por %p127, %p128
      %p130 = scmp.ne.s32.totalorder %s119, %s122
      %p131 = scmp.eq.s32.totalorder %s23, 1
      %p132 = por %p130, %p131
      %p133 = scmp.ne.s32.totalorder %s122, %s123
      %p134 = scmp.eq.s32.totalorder %s23, 0
      %p135 = por %p133, %p134
      %p136 = scmp.ne.s32.totalorder %s122, %s123
      %p137 = scmp.eq.s32.totalorder %s24, 1
      %p138 = por %p136, %p137
      %p140 = scmp.ne.s32.totalorder %s123, %s139
      %p141 = scmp.eq.s32.totalorder %s24, 0
      %p142 = por %p140, %p141
      %s143 = ssub.s32 %s25, %s44
      %s144 = ssub.s32 %s27, %s36
      %s145 = sor.u32 %s143, %s144
      %p146 = scmp.eq.s32.totalorder %s145, 0
      %s148 = sadd.s32 %s147, 1
      %s149 = scalar_select %p146, %s147, %s148
      %p152 = pneg %p146
      %p153 = scmp.eq.s32.totalorder %s18, 1
      %p154 = por %p152, %p153
      %p155 = scmp.ne.s32.totalorder %s147, %s150
      %p156 = scmp.eq.s32.totalorder %s18, 0
      %p157 = por %p155, %p156
      %p158 = scmp.ne.s32.totalorder %s147, %s150
      %p159 = scmp.eq.s32.totalorder %s23, 1
      %p160 = por %p158, %p159
      %p161 = scmp.ne.s32.totalorder %s150, %s151
      %p162 = scmp.eq.s32.totalorder %s23, 0
      %p163 = por %p161, %p162
      %p164 = scmp.ne.s32.totalorder %s150, %s151
      %p165 = scmp.eq.s32.totalorder %s24, 1
      %p166 = por %p164, %p165
      %p168 = scmp.ne.s32.totalorder %s151, %s167
      %p169 = scmp.eq.s32.totalorder %s24, 0
      %p170 = por %p168, %p169
      %s171 = ssub.s32 %s25, %s44
      %s172 = ssub.s32 %s26, %s40
      %s173 = sor.u32 %s171, %s172
      %s174 = ssub.s32 %s27, %s36
      %s175 = sor.u32 %s173, %s174
      %p176 = scmp.eq.s32.totalorder %s175, 0
      %s178 = sadd.s32 %s177, 1
      %s179 = scalar_select %p176, %s177, %s178
      %p182 = pneg %p176
      %p183 = scmp.eq.s32.totalorder %s18, 1
      %p184 = por %p182, %p183
      %p185 = scmp.ne.s32.totalorder %s177, %s180
      %p186 = scmp.eq.s32.totalorder %s18, 0
      %p187 = por %p185, %p186
      %p188 = scmp.ne.s32.totalorder %s177, %s180
      %p189 = scmp.eq.s32.totalorder %s23, 1
      %p190 = por %p188, %p189
      %p191 = scmp.ne.s32.totalorder %s180, %s181
      %p192 = scmp.eq.s32.totalorder %s23, 0
      %p193 = por %p191, %p192
      %p194 = scmp.ne.s32.totalorder %s180, %s181
      %p195 = scmp.eq.s32.totalorder %s24, 1
      %p196 = por %p194, %p195
      %p198 = scmp.ne.s32.totalorder %s181, %s197
      %p199 = scmp.eq.s32.totalorder %s24, 0
      %p200 = por %p198, %p199
      %p201 = scmp.le.s32.totalorder 1, %s18
      %p202 = scmp.lt.s32.totalorder %s18, 3
      %p203 = pnand %p201, %p202
      %p204 = pneg %p203
      // Predicated region
      $region9: #{tpu_custom_call.1} parent=5 // pred_check
        _
      $region10: #{tpu_custom_call.1} parent=5 // pred_check_branch
        %206 = sbr.rel (%p203) target = $region12
      $region11: #{tpu_custom_call.1} parent=5 // pred_region
        %s207 = ssub.s32 %s18, 1
        // Predicated region
        $region13: #{tpu_custom_call.1} parent=11 // pred_check
          %p208 = pneg %p86
        $region14: #{tpu_custom_call.1} parent=11 // pred_check_branch
          %210 = sbr.rel (%p208) target = $region16
        $region15: #{tpu_custom_call.1} parent=11 // pred_region
          %s212 = ssub.s32 2048, 2048
          %213 = vsyncadd [#allocation6], %s212
          %s214 = sshll.u32 [#allocation5], 4
          %s215 = int_to_ptr.vmem [resolvable:$true] %s214
          %220 = dma.hbm_to_vmem [thread:$0]  %s1, 2048, %s215, [#allocation6], 128, 128, 8
        $region16: #{tpu_custom_call.1} parent=11 // pred_fallthru
          _
        // Predicated region
        $region17: #{tpu_custom_call.1} parent=11 // pred_check
          %p221 = pneg %p107
        $region18: #{tpu_custom_call.1} parent=11 // pred_check_branch
          %223 = sbr.rel (%p221) target = $region20
        $region19: #{tpu_custom_call.1} parent=11 // pred_region
          _
        $region20: #{tpu_custom_call.1} parent=11 // pred_fallthru
          _
      $region12: #{tpu_custom_call.1} parent=5 // pred_fallthru
        _
      %p224 = scmp.lt.s32.totalorder %s18, 2
      // Predicated region
      $region21: #{tpu_custom_call.1} parent=5 // pred_check
        %p225 = pneg %p224
      $region22: #{tpu_custom_call.1} parent=5 // pred_check_branch
        %227 = sbr.rel (%p225) target = $region24
      $region23: #{tpu_custom_call.1} parent=5 // pred_region
        // Predicated region
        $region25: #{tpu_custom_call.1} parent=23 // pred_check
          %p228 = pneg %p59
        $region26: #{tpu_custom_call.1} parent=23 // pred_check_branch
          %230 = sbr.rel (%p228) target = $region28
        $region27: #{tpu_custom_call.1} parent=23 // pred_region
          %s231 = sand.u32 %s18, 1
          %s232 = scalar_lea.sflag [#allocation3], %s231
          %s233 = sand.u32 %s49, 1
          %s234 = smul.addr %s233, 8
          %s235 = scalar_lea.vmem [#allocation2], %s234
          %s237 = ssub.s32 128, 128
          %238 = vsyncadd %s232, %s237
          %s239 = sadd.s32 %s26, %s25
          %s240 = smul.addr %s239, 128
          %s241 = scalar_lea.hbm %s0, %s240
          %s243 = sshll.u32 %s235, 4
          %s244 = int_to_ptr.vmem [resolvable:$true] %s243
          %246 = dma.hbm_to_vmem [thread:$0]  %s241, 128, %s244, %s232
        $region28: #{tpu_custom_call.1} parent=23 // pred_fallthru
          _
        // Predicated region
        $region29: #{tpu_custom_call.1} parent=23 // pred_check
          %p247 = pneg %p129
        $region30: #{tpu_custom_call.1} parent=23 // pred_check_branch
          %249 = sbr.rel (%p247) target = $region32
        $region31: #{tpu_custom_call.1} parent=23 // pred_region
          %s250 = sand.u32 %s18, 1
          %s251 = scalar_lea.sflag [#allocation3], %s250
          %s252 = sand.u32 %s119, 1
          %s253 = smul.addr %s252, 128
          %s254 = scalar_lea.vmem [#allocation7], %s253
          %s255 = smul.u32 16, %s27
          %s257 = ssub.s32 2048, 2048
          %258 = vsyncadd %s251, %s257
          %s259 = smul.addr %s25, 16
          %s260 = sadd.s32 %s255, %s259
          %s261 = smul.addr %s260, 128
          %s262 = scalar_lea.hbm %s3, %s261
          %s263 = sshll.u32 %s254, 4
          %s264 = int_to_ptr.vmem [resolvable:$true] %s263
          %269 = dma.hbm_to_vmem [thread:$0]  %s262, 2048, %s264, %s251, 128, 128, 8
        $region32: #{tpu_custom_call.1} parent=23 // pred_fallthru
          _
        // Predicated region
        $region33: #{tpu_custom_call.1} parent=23 // pred_check
          %p270 = pneg %p157
        $region34: #{tpu_custom_call.1} parent=23 // pred_check_branch
          %272 = sbr.rel (%p270) target = $region36
        $region35: #{tpu_custom_call.1} parent=23 // pred_region
          %p273 = scmp.lt.s32.totalorder %s25, 1
          %s274 = scalar_select %p273, %s25, 1
          %p275 = scmp.lt.s32.totalorder %s27, 0
          %s276 = scalar_select %p275, %s27, 0
          %s277 = sadd.s32 %s276, %s274
          %s278 = scalar_lea.vmem %s4, %s277
        $region36: #{tpu_custom_call.1} parent=23 // pred_fallthru
          _
      $region24: #{tpu_custom_call.1} parent=5 // pred_fallthru
        _
      %p279 = scmp.le.s32.totalorder 1, %s18
      %p280 = scmp.lt.s32.totalorder %s18, 3
      %p281 = pnand %p279, %p280
      %p282 = pneg %p281
      // Predicated region
      $region37: #{tpu_custom_call.1} parent=5 // pred_check
        _
      $region38: #{tpu_custom_call.1} parent=5 // pred_check_branch
        %284 = sbr.rel (%p281) target = $region40
      $region39: #{tpu_custom_call.1} parent=5 // pred_region
        %s285 = ssub.s32 %s18, 1
        %s286 = sand.u32 %s23, 1
        %s287 = scalar_lea.sflag [#allocation3], %s286
        %s288 = sand.u32 %s52, 1
        %s289 = smul.addr %s288, 8
        %s290 = scalar_lea.vmem [#allocation2], %s289
        // Predicated region
        $region41: #{tpu_custom_call.1} parent=39 // pred_check
          %p291 = pneg %p65
        $region42: #{tpu_custom_call.1} parent=39 // pred_check_branch
          %293 = sbr.rel (%p291) target = $region44
        $region43: #{tpu_custom_call.1} parent=39 // pred_region
          %294 = dma.done %s287, 128
        $region44: #{tpu_custom_call.1} parent=39 // pred_fallthru
          _
        // Predicated region
        $region45: #{tpu_custom_call.1} parent=39 // pred_check
          %p295 = pneg %p86
        $region46: #{tpu_custom_call.1} parent=39 // pred_check_branch
          %297 = sbr.rel (%p295) target = $region48
        $region47: #{tpu_custom_call.1} parent=39 // pred_region
          %298 = dma.done [#allocation6], 2048
        $region48: #{tpu_custom_call.1} parent=39 // pred_fallthru
          _
        %s299 = sand.u32 %s23, 1
        %s300 = scalar_lea.sflag [#allocation3], %s299
        %s301 = sand.u32 %s122, 1
        %s302 = smul.addr %s301, 128
        %s303 = scalar_lea.vmem [#allocation7], %s302
        // Predicated region
        $region49: #{tpu_custom_call.1} parent=39 // pred_check
          %p304 = pneg %p135
        $region50: #{tpu_custom_call.1} parent=39 // pred_check_branch
          %306 = sbr.rel (%p304) target = $region52
        $region51: #{tpu_custom_call.1} parent=39 // pred_region
          %307 = dma.done %s300, 2048
        $region52: #{tpu_custom_call.1} parent=39 // pred_fallthru
          _
        %s308 = sand.u32 %s23, 1
        %s309 = scalar_lea.sflag [#allocation3], %s308
        %s310 = sand.u32 %s52, 1
        %s311 = smul.addr %s310, 8
        %s312 = scalar_lea.vmem [#allocation2], %s311
        %p313 = pneg %p65
        %p314 = pneg %p62
        %p315 = pneg %p86
        %p316 = pneg %p83
        %p317 = pneg %p107
        %p318 = pneg %p104
        %s319 = sand.u32 %s23, 1
        %s320 = scalar_lea.sflag [#allocation3], %s319
        %s321 = sand.u32 %s122, 1
        %s322 = smul.addr %s321, 128
        %s323 = scalar_lea.vmem [#allocation7], %s322
        %p324 = pneg %p135
        %p325 = pneg %p132
        %p326 = scmp.lt.s32.totalorder %s28, 1
        %s327 = scalar_select %p326, %s28, 1
        %p328 = scmp.lt.s32.totalorder %s30, 0
        %s329 = scalar_select %p328, %s30, 0
        %s330 = sadd.s32 %s329, %s327
        %s331 = scalar_lea.vmem %s4, %s330
        %p332 = pneg %p163
        %p333 = pneg %p160
        %p334 = pneg %p193
        %p335 = pneg %p190
        %s336 = sand.u32 %s180, 1
        %s337 = scalar_lea.sflag [#allocation4], %s336
        %s338 = sand.u32 %s180, 1
        %s339 = smul.addr %s338, 8
        %s340 = scalar_lea.vmem [#allocation8], %s339
        %s341 = smul.u32 16, %s30
        %p342 = scmp.lt.s32.totalorder %s28, 1
        %s343 = scalar_select %p342, %s28, 1
        %p344 = scmp.lt.s32.totalorder %s30, 0
        %s345 = scalar_select %p344, %s30, 0
        %s346 = sadd.s32 %s345, %s343
        %s347 = scalar_lea.vmem %s4, %s346
        %v348 = vld [vmem:[%s290] sm:$0xff]
        %v349 = vld [vmem:[#allocation5] sm:$0xff]
        %v350 = vld [vmem:[#allocation5 + $0x8] sm:$0xff]
        %v351 = vld [vmem:[#allocation5 + $0x10] sm:$0xff]
        %v352 = vld [vmem:[#allocation5 + $0x18] sm:$0xff]
        %v353 = vld [vmem:[#allocation5 + $0x20] sm:$0xff]
        %v354 = vld [vmem:[#allocation5 + $0x28] sm:$0xff]
        %v355 = vld [vmem:[#allocation5 + $0x30] sm:$0xff]
        %v356 = vld [vmem:[#allocation5 + $0x38] sm:$0xff]
        %v357 = vld [vmem:[#allocation5 + $0x40] sm:$0xff]
        %v358 = vld [vmem:[#allocation5 + $0x48] sm:$0xff]
        %v359 = vld [vmem:[#allocation5 + $0x50] sm:$0xff]
        %v360 = vld [vmem:[#allocation5 + $0x58] sm:$0xff]
        %v361 = vld [vmem:[#allocation5 + $0x60] sm:$0xff]
        %v362 = vld [vmem:[#allocation5 + $0x68] sm:$0xff]
        %v363 = vld [vmem:[#allocation5 + $0x70] sm:$0xff]
        %v364 = vld [vmem:[#allocation5 + $0x78] sm:$0xff]
        %v365 = vld [vmem:[%s2] sm:$0x1]
        %v367 = vlaneseq
        %v368 = vshrl.u32 %v367, 7
        %v369 = vsub.s32 0, %v368
        %v370 = vrot.slane %v365, %v369
        %372 = vmatprep.subr.mxu0 0.0
        %373 = vmatpush1.msra.mxu0 %v349
        %374 = vmatprep.subr.mxu0 0.0
        %375 = vmatpush1.msra.mxu0 %v350
        %376 = vmatprep.subr.mxu0 0.0
        %377 = vmatpush1.msra.mxu0 %v351
        %378 = vmatprep.subr.mxu0 0.0
        %379 = vmatpush1.msra.mxu0 %v352
        %380 = vmatprep.subr.mxu0 0.0
        %381 = vmatpush1.msra.mxu0 %v353
        %382 = vmatprep.subr.mxu0 0.0
        %383 = vmatpush1.msra.mxu0 %v354
        %384 = vmatprep.subr.mxu0 0.0
        %385 = vmatpush1.msra.mxu0 %v355
        %386 = vmatprep.subr.mxu0 0.0
        %387 = vmatpush1.msra.mxu0 %v356
        %388 = vmatprep.subr.mxu0 0.0
        %389 = vmatpush1.msra.mxu0 %v357
        %390 = vmatprep.subr.mxu0 0.0
        %391 = vmatpush1.msra.mxu0 %v358
        %392 = vmatprep.subr.mxu0 0.0
        %393 = vmatpush1.msra.mxu0 %v359
        %394 = vmatprep.subr.mxu0 0.0
        %395 = vmatpush1.msra.mxu0 %v360
        %396 = vmatprep.subr.mxu0 0.0
        %397 = vmatpush1.msra.mxu0 %v361
        %398 = vmatprep.subr.mxu0 0.0
        %399 = vmatpush1.msra.mxu0 %v362
        %400 = vmatprep.subr.mxu0 0.0
        %401 = vmatpush1.msra.mxu0 %v363
        %402 = vmatprep.subr.mxu0 0.0
        %403 = vmatpush1.msra.mxu0 %v364
        %404 = vmatprep.subr.mxu0 0.0
        %405 = vmatpush1.msra.mxu0 0.0
        %406 = vmatprep.subr.mxu0 0.0
        %407 = vmatpush1.msra.mxu0 0.0
        %408 = vmatprep.subr.mxu0 0.0
        %409 = vmatpush1.msra.mxu0 0.0
        %410 = vmatprep.subr.mxu0 0.0
        %411 = vmatpush1.msra.mxu0 0.0
        %412 = vmatprep.subr.mxu0 0.0
        %413 = vmatpush1.msra.mxu0 0.0
        %414 = vmatprep.subr.mxu0 0.0
        %415 = vmatpush1.msra.mxu0 0.0
        %416 = vmatprep.subr.mxu0 0.0
        %417 = vmatpush1.msra.mxu0 0.0
        %418 = vmatprep.subr.mxu0 0.0
        %419 = vmatpush1.msra.mxu0 0.0
        %420 = vmatprep.subr.mxu0 0.0
        %421 = vmatpush1.msra.mxu0 0.0
        %422 = vmatprep.subr.mxu0 0.0
        %423 = vmatpush1.msra.mxu0 0.0
        %424 = vmatprep.subr.mxu0 0.0
        %425 = vmatpush1.msra.mxu0 0.0
        %426 = vmatprep.subr.mxu0 0.0
        %427 = vmatpush1.msra.mxu0 0.0
        %428 = vmatprep.subr.mxu0 0.0
        %429 = vmatpush1.msra.mxu0 0.0
        %430 = vmatprep.subr.mxu0 0.0
        %431 = vmatpush1.msra.mxu0 0.0
        %432 = vmatprep.subr.mxu0 0.0
        %433 = vmatpush1.msra.mxu0 0.0
        %434 = vmatprep.subr.mxu0 0.0
        %435 = vmatpush1.msra.mxu0 0.0
        %436 = vmatprep.mubr.f32.mxu0 0.0
        %437 = vmatmul.mubr.f32.gmra.mrb[0].mxu0 %v348
        %v438 = vpop.f32.mrb[0].mxu0
        %v439 = vadd.f32 %v370, %v438
        %v440 = vpop.f32.mrb[0].mxu0
        %441 = vdwg.mxu0
        %v442 = vmax.f32 %v439, 0.0
        %v443 = vld [vmem:[%s303] sm:$0xff]
        %v444 = vld [vmem:[%s303 + $0x8] sm:$0xff]
        %v445 = vld [vmem:[%s303 + $0x10] sm:$0xff]
        %v446 = vld [vmem:[%s303 + $0x18] sm:$0xff]
        %v447 = vld [vmem:[%s303 + $0x20] sm:$0xff]
        %v448 = vld [vmem:[%s303 + $0x28] sm:$0xff]
        %v449 = vld [vmem:[%s303 + $0x30] sm:$0xff]
        %v450 = vld [vmem:[%s303 + $0x38] sm:$0xff]
        %v451 = vld [vmem:[%s303 + $0x40] sm:$0xff]
        %v452 = vld [vmem:[%s303 + $0x48] sm:$0xff]
        %v453 = vld [vmem:[%s303 + $0x50] sm:$0xff]
        %v454 = vld [vmem:[%s303 + $0x58] sm:$0xff]
        %v455 = vld [vmem:[%s303 + $0x60] sm:$0xff]
        %v456 = vld [vmem:[%s303 + $0x68] sm:$0xff]
        %v457 = vld [vmem:[%s303 + $0x70] sm:$0xff]
        %v458 = vld [vmem:[%s303 + $0x78] sm:$0xff]
        %459 = vmatprep.subr.mxu0 0.0
        %460 = vmatpush1.xpose.msra.mxu0 %v443
        %461 = vmatprep.subr.mxu0 0.0
        %462 = vmatpush1.xpose.msra.mxu0 %v444
        %463 = vmatprep.subr.mxu0 0.0
        %464 = vmatpush1.xpose.msra.mxu0 %v445
        %465 = vmatprep.subr.mxu0 0.0
        %466 = vmatpush1.xpose.msra.mxu0 %v446
        %467 = vmatprep.subr.mxu0 0.0
        %468 = vmatpush1.xpose.msra.mxu0 %v447
        %469 = vmatprep.subr.mxu0 0.0
        %470 = vmatpush1.xpose.msra.mxu0 %v448
        %471 = vmatprep.subr.mxu0 0.0
        %472 = vmatpush1.xpose.msra.mxu0 %v449
        %473 = vmatprep.subr.mxu0 0.0
        %474 = vmatpush1.xpose.msra.mxu0 %v450
        %475 = vmatprep.subr.mxu0 0.0
        %476 = vmatpush1.xpose.msra.mxu0 %v451
        %477 = vmatprep.subr.mxu0 0.0
        %478 = vmatpush1.xpose.msra.mxu0 %v452
        %479 = vmatprep.subr.mxu0 0.0
        %480 = vmatpush1.xpose.msra.mxu0 %v453
        %481 = vmatprep.subr.mxu0 0.0
        %482 = vmatpush1.xpose.msra.mxu0 %v454
        %483 = vmatprep.subr.mxu0 0.0
        %484 = vmatpush1.xpose.msra.mxu0 %v455
        %485 = vmatprep.subr.mxu0 0.0
        %486 = vmatpush1.xpose.msra.mxu0 %v456
        %487 = vmatprep.subr.mxu0 0.0
        %488 = vmatpush1.xpose.msra.mxu0 %v457
        %489 = vmatprep.subr.mxu0 0.0
        %490 = vmatpush1.xpose.msra.mxu0 %v458
        %491 = vmatprep.subr.mxu0 0.0
        %492 = vmatpush1.xpose.msra.mxu0 0.0
        %493 = vmatprep.subr.mxu0 0.0
        %494 = vmatpush1.xpose.msra.mxu0 0.0
        %495 = vmatprep.subr.mxu0 0.0
        %496 = vmatpush1.xpose.msra.mxu0 0.0
        %497 = vmatprep.subr.mxu0 0.0
        %498 = vmatpush1.xpose.msra.mxu0 0.0
        %499 = vmatprep.subr.mxu0 0.0
        %500 = vmatpush1.xpose.msra.mxu0 0.0
        %501 = vmatprep.subr.mxu0 0.0
        %502 = vmatpush1.xpose.msra.mxu0 0.0
        %503 = vmatprep.subr.mxu0 0.0
        %504 = vmatpush1.xpose.msra.mxu0 0.0
        %505 = vmatprep.subr.mxu0 0.0
        %506 = vmatpush1.xpose.msra.mxu0 0.0
        %507 = vmatprep.subr.mxu0 0.0
        %508 = vmatpush1.xpose.msra.mxu0 0.0
        %509 = vmatprep.subr.mxu0 0.0
        %510 = vmatpush1.xpose.msra.mxu0 0.0
        %511 = vmatprep.subr.mxu0 0.0
        %512 = vmatpush1.xpose.msra.mxu0 0.0
        %513 = vmatprep.subr.mxu0 0.0
        %514 = vmatpush1.xpose.msra.mxu0 0.0
        %515 = vmatprep.subr.mxu0 0.0
        %516 = vmatpush1.xpose.msra.mxu0 0.0
        %517 = vmatprep.subr.mxu0 0.0
        %518 = vmatpush1.xpose.msra.mxu0 0.0
        %519 = vmatprep.subr.mxu0 0.0
        %520 = vmatpush1.xpose.msra.mxu0 0.0
        %521 = vmatprep.subr.mxu0 0.0
        %522 = vmatpush1.xpose.msra.mxu0 0.0
        %523 = vmatprep.mubr.f32.mxu0 0.0
        %524 = vmatmul.mubr.f32.gmra.mrb[0].mxu0 %v442
        %v525 = vpop.f32.mrb[0].mxu0
        %v526 = vadd.f32 0.0, %v525
        %v527 = vpop.f32.mrb[0].mxu0
        %528 = vdwg.mxu0
        %v529 = vld [vmem:[%s347] sm:$0x1]
        %vm530 = vcmp.gt.f32.partialorder %v529, 0.0
        %v531 = vsel %vm530, 1, 0
        %v532 = vlaneseq
        %v533 = vshrl.u32 %v532, 7
        %v534 = vsub.s32 0, %v533
        %v535 = vrot.slane %v531, %v534
        %vm536 = vcmp.eq.s32.totalorder %v535, 1
        %v537 = vsel %vm536, %v526, -1000000.0
        %538 = vst [vmem:[%s340] sm:$0xff] %v537
        %s539 = sand.u32 %s180, 1
        %s540 = scalar_lea.sflag [#allocation4], %s539
        %s541 = sand.u32 %s180, 1
        %s542 = smul.addr %s541, 8
        %s543 = scalar_lea.vmem [#allocation8], %s542
        // Predicated region
        $region53: #{tpu_custom_call.1} parent=39 // pred_check
          %p544 = pneg %p190
        $region54: #{tpu_custom_call.1} parent=39 // pred_check_branch
          %546 = sbr.rel (%p544) target = $region56
        $region55: #{tpu_custom_call.1} parent=39 // pred_region
          %s548 = ssub.s32 128, 128
          %549 = vsyncadd %s540, %s548
          %s550 = sadd.s32 %s30, %s29
          %s551 = sadd.s32 %s550, %s28
          %s552 = smul.addr %s551, 128
          %s553 = scalar_lea.hbm %s5, %s552
          %s555 = sshll.u32 %s543, 4
          %s556 = int_to_ptr.vmem [resolvable:$true] %s555
          %558 = dma.vmem_to_hbm [thread:$0]  %s556, 128, %s553, %s540
        $region56: #{tpu_custom_call.1} parent=39 // pred_fallthru
          _
      $region40: #{tpu_custom_call.1} parent=5 // pred_fallthru
        _
      %p559 = scmp.le.s32.totalorder 2, %s18
      // Predicated region
      $region57: #{tpu_custom_call.1} parent=5 // pred_check
        %p560 = pneg %p559
      $region58: #{tpu_custom_call.1} parent=5 // pred_check_branch
        %562 = sbr.rel (%p560) target = $region60
      $region59: #{tpu_custom_call.1} parent=5 // pred_region
        %s563 = ssub.s32 %s18, 2
        // Predicated region
        $region61: #{tpu_custom_call.1} parent=59 // pred_check
          %p564 = pneg %p196
        $region62: #{tpu_custom_call.1} parent=59 // pred_check_branch
          %566 = sbr.rel (%p564) target = $region64
        $region63: #{tpu_custom_call.1} parent=59 // pred_region
          %s567 = sand.u32 %s181, 1
          %s568 = scalar_lea.sflag [#allocation4], %s567
          %s569 = sand.u32 %s181, 1
          %s570 = smul.addr %s569, 8
          %s571 = scalar_lea.vmem [#allocation8], %s570
          %572 = dma.done %s568, 128
        $region64: #{tpu_custom_call.1} parent=59 // pred_fallthru
          _
      $region60: #{tpu_custom_call.1} parent=5 // pred_fallthru
        _
    $region6: #{tpu_custom_call.1} parent=1 // loop_footer
      %s22 = sadd.s32 1, %s18
    $region7: #{tpu_custom_call.1} parent=1 // loop_footer_branch
      %17 = sbr.rel target = $region3
    $region8: #{tpu_custom_call.1} parent=1 // loop_exit
      _
    %573 = vsyncpa [#allocation3], 1
    %s574 = scalar_lea.sflag [#allocation3], 1
    %575 = vsyncpa %s574, 1
    %576 = vsyncpa [#allocation6], 1
    %577 = vsyncpa [#allocation4], 1
    %s578 = scalar_lea.sflag [#allocation4], 1
    %579 = vsyncpa %s578, 1

</llo_original>
